<compile_context>
chip_gen: v5e
topology: v5e:2x2
jax: 0.10.0
libtpu: 0.0.40
codegen_flags: <defaults>
</compile_context>

<pallas_src>
import jax
import jax.numpy as jnp
from jax.experimental import pallas as pl
from jax.experimental.pallas import tpu as pltpu


def _policy_kernel(x_ref,      # (T, Bb, I)   bf16, time-major
                   w_ih_ref,   # (I, 4H)      bf16, g-gate columns pre-scaled by 2
                   w_hh_ref,   # (H, 4H)      bf16, g-gate columns pre-scaled by 2
                   b_ref,      # (1, 4H)      f32,  (b_ih + b_hh), g-gate scaled by 2
                   w1_ref,     # (H, 128)     bf16
                   b1_ref,     # (1, 128)     f32
                   w2_ref,     # (128, OP)    bf16, zero-padded classes
                   b2_ref,     # (1, OP)      f32,  -1e30 in padded classes
                   out_ref):   # (Bb, OP)     f32
    T, Bb, I = x_ref.shape
    H = w_hh_ref.shape[0]

    w_hh = w_hh_ref[...]                                     # bf16, resident for the loop

    # ---- Hoisted input projection: one (T*Bb, I) @ (I, 4H) MXU matmul, bias folded ----
    x_flat = x_ref[...].reshape(T * Bb, I)                   # bf16
    gx = jnp.dot(x_flat, w_ih_ref[...],
                 preferred_element_type=jnp.float32) + b_ref[...]
    gx = gx.reshape(T, Bb, 4 * H)                            # f32, gx[t] is contiguous

    h = jnp.zeros((Bb, H), jnp.float32)
    c = jnp.zeros((Bb, H), jnp.float32)

    # ---- Statically unrolled recurrence: only h @ w_hh + 1 sigmoid on the chain ----
    for t in range(T):
        if t == 0:
            gates = gx[0]                                    # h == 0 at t=0
        else:
            gates = jnp.dot(h.astype(jnp.bfloat16), w_hh,
                            preferred_element_type=jnp.float32) + gx[t]
        sig = jax.nn.sigmoid(gates)                          # single (Bb,4H) EUP push/step
        i_g = sig[:, 0 * H:1 * H]
        f_g = sig[:, 1 * H:2 * H]
        g_g = 2.0 * sig[:, 2 * H:3 * H] - 1.0                # tanh via pre-scaled weights
        o_g = sig[:, 3 * H:4 * H]
        c = f_g * c + i_g * g_g
        h = o_g * jnp.tanh(c)                                # only (Bb,H) tanh remains

    # ---- MLP head + softmax over the (padded, lane-dense) class axis ----
    z1 = jnp.dot(h.astype(jnp.bfloat16), w1_ref[...],
                 preferred_element_type=jnp.float32) + b1_ref[...]
    z1 = jnp.maximum(z1, 0.0)                                # ReLU
    z2 = jnp.dot(z1.astype(jnp.bfloat16), w2_ref[...],
                 preferred_element_type=jnp.float32) + b2_ref[...]

    m = jnp.max(z2, axis=1, keepdims=True)
    e = jnp.exp(z2 - m)                                      # padded classes -> exp ~= 0
    denom = jnp.sum(e, axis=1, keepdims=True)
    out_ref[...] = e * pl.reciprocal(denom, approx=False)    # exact -> real rows sum to 1


@jax.jit
def policy_network_forward(x, w_ih, w_hh, b, w1, b1, w2, b2):
    """x: (B, T, I) float32 (batch_first, like PyTorch) -> (B, O) softmax probs."""
    B, T, I = x.shape
    H = w_hh.shape[0]
    O = w2.shape[1]
    OP = ((O + 127) // 128) * 128                            # lane-dense class axis

    # ---- One-time weight prep (outside the kernel) ----
    # Fold tanh into sigmoid: scale the g-gate columns [2H:3H] by 2.
    gate_scale = jnp.concatenate(
        [jnp.ones((1, 2 * H), jnp.float32),
         jnp.full((1, H), 2.0, jnp.float32),
         jnp.ones((1, H), jnp.float32)], axis=1)
    w_ih_s = (w_ih * gate_scale).astype(jnp.bfloat16)
    w_hh_s = (w_hh * gate_scale).astype(jnp.bfloat16)
    b_s = (b * gate_scale).astype(jnp.float32)

    w1_b = w1.astype(jnp.bfloat16)
    # Pad classes to OP lanes: zero weights, -1e30 bias => padded probs underflow to 0.
    w2_p = jnp.zeros((w2.shape[0], OP), jnp.float32).at[:, :O].set(w2).astype(jnp.bfloat16)
    b2_p = jnp.full((1, OP), -1e30, jnp.float32).at[:, :O].set(b2)

    # Time-major input (one cheap XLA transpose) in bf16.
    x_tm = jnp.transpose(x, (1, 0, 2)).astype(jnp.bfloat16)  # (T, B, I)

    # Batch tiling: full batch at toy sizes; otherwise a multiple of 8 picked so the grid
    # has >=2 steps (v7x megacore) and at most 256 rows per block (fills v6e/v7x MXU).
    if B <= 16:
        block_b = B
    else:
        half = -(-B // 2)
        block_b = min(256, max(8, ((half + 7) // 8) * 8))
    grid = (pl.cdiv(B, block_b),)

    def full2d(shape):
        return pl.BlockSpec(shape, lambda i: (0, 0))

    out = pl.pallas_call(
        _policy_kernel,
        out_shape=jax.ShapeDtypeStruct((B, OP), jnp.float32),
        grid=grid,
        in_specs=[
            pl.BlockSpec((T, block_b, I), lambda i: (0, i, 0)),   # x, tiled on batch
            full2d(w_ih_s.shape),
            full2d(w_hh_s.shape),
            full2d(b_s.shape),
            full2d(w1_b.shape),
            full2d(b1.shape),
            full2d(w2_p.shape),
            full2d(b2_p.shape),
        ],
        out_specs=pl.BlockSpec((block_b, OP), lambda i: (i, 0)),  # lane-dense store
        compiler_params=pltpu.CompilerParams(
            dimension_semantics=("parallel",)),
    )(x_tm, w_ih_s, w_hh_s, b_s, w1_b, b1, w2_p, b2_p)

    return out[:, :O]


def _reference_forward(x, w_ih, w_hh, b, w1, b1, w2, b2):
    """Pure-JAX f32 reference of the same forward pass (for validation)."""
    B, T, I = x.shape
    H = w_hh.shape[0]
    h = jnp.zeros((B, H), jnp.float32)
    c = jnp.zeros((B, H), jnp.float32)
    for t in range(T):
        g = x[:, t, :] @ w_ih + h @ w_hh + b
        i_g = jax.nn.sigmoid(g[:, 0 * H:1 * H])
        f_g = jax.nn.sigmoid(g[:, 1 * H:2 * H])
        g_g = jnp.tanh(g[:, 2 * H:3 * H])
        o_g = jax.nn.sigmoid(g[:, 3 * H:4 * H])
        c = f_g * c + i_g * g_g
        h = o_g * jnp.tanh(c)
    z1 = jnp.maximum(h @ w1 + b1, 0.0)
    z2 = z1 @ w2 + b2
    return jax.nn.softmax(z2, axis=1)


if __name__ == "__main__":
    # Small shapes consistent with the module.
    B, T = 2, 8                      # batch, sequence length
    INPUT_SIZE = 16                  # input_size
    H = 32                           # lstm_hidden_size
    OUTPUT_SIZE = 4                  # output_size

    key = jax.random.PRNGKey(0)
    ks = jax.random.split(key, 8)
    scale_lstm = 1.0 / jnp.sqrt(H)

    # Deterministic synthetic parameters (PyTorch LSTM gate order [i, f, g, o]).
    w_ih = jax.random.uniform(ks[0], (INPUT_SIZE, 4 * H), jnp.float32,
                              -scale_lstm, scale_lstm)            # = weight_ih_l0.T
    w_hh = jax.random.uniform(ks[1], (H, 4 * H), jnp.float32,
                              -scale_lstm, scale_lstm)            # = weight_hh_l0.T
    b = jax.random.uniform(ks[2], (1, 4 * H), jnp.float32,
                           -scale_lstm, scale_lstm)               # = bias_ih + bias_hh

    w1 = jax.random.uniform(ks[3], (H, 128), jnp.float32,
                            -1.0 / jnp.sqrt(H), 1.0 / jnp.sqrt(H))          # = fc1.weight.T
    b1 = jax.random.uniform(ks[4], (1, 128), jnp.float32,
                            -1.0 / jnp.sqrt(H), 1.0 / jnp.sqrt(H))
    w2 = jax.random.uniform(ks[5], (128, OUTPUT_SIZE), jnp.float32,
                            -1.0 / jnp.sqrt(128.0), 1.0 / jnp.sqrt(128.0))  # = fc2.weight.T
    b2 = jax.random.uniform(ks[6], (1, OUTPUT_SIZE), jnp.float32,
                            -1.0 / jnp.sqrt(128.0), 1.0 / jnp.sqrt(128.0))

    x = jax.random.normal(ks[7], (B, T, INPUT_SIZE), jnp.float32)

    out = policy_network_forward(x, w_ih, w_hh, b, w1, b1, w2, b2)
    out = jax.block_until_ready(out)

    ref = _reference_forward(x, w_ih, w_hh, b, w1, b1, w2, b2)
    assert out.shape == (B, OUTPUT_SIZE)
    # bf16 MXU operands (f32 accumulation/state) loosen the tolerance slightly.
    assert jnp.allclose(out, ref, atol=2e-2, rtol=2e-2), "mismatch vs JAX reference"
    assert jnp.allclose(jnp.sum(out, axis=1), 1.0, atol=1e-5), "softmax rows must sum to 1"

    print("KERNEL_OK")
</pallas_src>

<mosaic_0001>
module attributes {stable_mosaic.version = 11 : i64} {
  func.func @_policy_kernel(%arg0: i32, %arg1: memref<8x2x16xbf16, #tpu.memory_space<vmem>>, %arg2: memref<16x128xbf16, #tpu.memory_space<vmem>>, %arg3: memref<32x128xbf16, #tpu.memory_space<vmem>>, %arg4: memref<1x128xf32, #tpu.memory_space<vmem>>, %arg5: memref<32x128xbf16, #tpu.memory_space<vmem>>, %arg6: memref<1x128xf32, #tpu.memory_space<vmem>>, %arg7: memref<128x128xbf16, #tpu.memory_space<vmem>>, %arg8: memref<1x128xf32, #tpu.memory_space<vmem>>, %arg9: memref<2x128xf32, #tpu.memory_space<vmem>>) attributes {dimension_semantics = [#tpu.dimension_semantics<parallel>], iteration_bounds = array<i64: 1>, scalar_prefetch = 0 : i64, scratch_operands = 0 : i64, tpu.core_type = #tpu.core_type<tc>, window_params = [{transform_indices = @transform_0, window_bounds = array<i64: 8, 2, 16>}, {pipeline_mode = #tpu.pipeline_mode<synchronous>, transform_indices = @transform_1, window_bounds = array<i64: 16, 128>}, {pipeline_mode = #tpu.pipeline_mode<synchronous>, transform_indices = @transform_2, window_bounds = array<i64: 32, 128>}, {pipeline_mode = #tpu.pipeline_mode<synchronous>, transform_indices = @transform_3, window_bounds = array<i64: 1, 128>}, {pipeline_mode = #tpu.pipeline_mode<synchronous>, transform_indices = @transform_4, window_bounds = array<i64: 32, 128>}, {pipeline_mode = #tpu.pipeline_mode<synchronous>, transform_indices = @transform_5, window_bounds = array<i64: 1, 128>}, {pipeline_mode = #tpu.pipeline_mode<synchronous>, transform_indices = @transform_6, window_bounds = array<i64: 128, 128>}, {pipeline_mode = #tpu.pipeline_mode<synchronous>, transform_indices = @transform_7, window_bounds = array<i64: 1, 128>}, {transform_indices = @transform_8, window_bounds = array<i64: 2, 128>}]} {
    %c0 = arith.constant 0 : index
    %c0_0 = arith.constant 0 : index
    %0 = vector.load %arg3[%c0, %c0_0] : memref<32x128xbf16, #tpu.memory_space<vmem>>, vector<32x128xbf16>
    %c0_1 = arith.constant 0 : index
    %c0_2 = arith.constant 0 : index
    %c0_3 = arith.constant 0 : index
    %1 = vector.load %arg1[%c0_1, %c0_2, %c0_3] : memref<8x2x16xbf16, #tpu.memory_space<vmem>>, vector<8x2x16xbf16>
    %2 = vector.shape_cast %1 : vector<8x2x16xbf16> to vector<16x16xbf16>
    %c0_4 = arith.constant 0 : index
    %c0_5 = arith.constant 0 : index
    %3 = vector.load %arg2[%c0_4, %c0_5] : memref<16x128xbf16, #tpu.memory_space<vmem>>, vector<16x128xbf16>
    %cst = arith.constant dense<0.000000e+00> : vector<16x128xf32>
    %4 = tpu.matmul %2, %3, %cst {dimension_numbers = #tpu.dot_dimension_numbers<[1], [0], [0], [1], [0, 0, 1, 1], [], []>} : vector<16x16xbf16>, vector<16x128xbf16>, vector<16x128xf32> -> vector<16x128xf32>
    %c0_6 = arith.constant 0 : index
    %c0_7 = arith.constant 0 : index
    %5 = vector.load %arg4[%c0_6, %c0_7] : memref<1x128xf32, #tpu.memory_space<vmem>>, vector<1x128xf32>
    %6 = vector.broadcast %5 : vector<1x128xf32> to vector<16x128xf32>
    %7 = arith.addf %4, %6 : vector<16x128xf32>
    %8 = vector.shape_cast %7 : vector<16x128xf32> to vector<8x2x128xf32>
    %cst_8 = arith.constant 0.000000e+00 : f32
    %9 = vector.broadcast %cst_8 : f32 to vector<2x32xf32>
    %10 = vector.extract_strided_slice %8 {offsets = [0, 0, 0], sizes = [1, 2, 128], strides = [1, 1, 1]} : vector<8x2x128xf32> to vector<1x2x128xf32>
    %11 = vector.shape_cast %10 : vector<1x2x128xf32> to vector<2x128xf32>
    %12 = arith.negf %11 : vector<2x128xf32>
    %13 = math.exp %12 : vector<2x128xf32>
    %cst_9 = arith.constant 1.000000e+00 : f32
    %14 = vector.broadcast %cst_9 : f32 to vector<2x128xf32>
    %15 = arith.addf %14, %13 : vector<2x128xf32>
    %16 = arith.divf %14, %15 : vector<2x128xf32>
    %17 = vector.extract_strided_slice %16 {offsets = [0, 0], sizes = [2, 32], strides = [1, 1]} : vector<2x128xf32> to vector<2x32xf32>
    %18 = vector.extract_strided_slice %16 {offsets = [0, 32], sizes = [2, 32], strides = [1, 1]} : vector<2x128xf32> to vector<2x32xf32>
    %19 = vector.extract_strided_slice %16 {offsets = [0, 64], sizes = [2, 32], strides = [1, 1]} : vector<2x128xf32> to vector<2x32xf32>
    %cst_10 = arith.constant 2.000000e+00 : f32
    %20 = vector.broadcast %cst_10 : f32 to vector<2x32xf32>
    %21 = arith.mulf %20, %19 : vector<2x32xf32>
    %cst_11 = arith.constant 1.000000e+00 : f32
    %22 = vector.broadcast %cst_11 : f32 to vector<2x32xf32>
    %23 = arith.subf %21, %22 : vector<2x32xf32>
    %24 = vector.extract_strided_slice %16 {offsets = [0, 96], sizes = [2, 32], strides = [1, 1]} : vector<2x128xf32> to vector<2x32xf32>
    %25 = arith.mulf %18, %9 : vector<2x32xf32>
    %26 = arith.mulf %17, %23 : vector<2x32xf32>
    %27 = arith.addf %25, %26 : vector<2x32xf32>
    %28 = math.tanh %27 : vector<2x32xf32>
    %29 = arith.mulf %24, %28 : vector<2x32xf32>
    %30 = arith.truncf %29 : vector<2x32xf32> to vector<2x32xbf16>
    %cst_12 = arith.constant dense<0.000000e+00> : vector<2x128xf32>
    %31 = tpu.matmul %30, %0, %cst_12 {dimension_numbers = #tpu.dot_dimension_numbers<[1], [0], [0], [1], [0, 0, 1, 1], [], []>} : vector<2x32xbf16>, vector<32x128xbf16>, vector<2x128xf32> -> vector<2x128xf32>
    %32 = vector.extract_strided_slice %8 {offsets = [1, 0, 0], sizes = [1, 2, 128], strides = [1, 1, 1]} : vector<8x2x128xf32> to vector<1x2x128xf32>
    %33 = vector.shape_cast %32 : vector<1x2x128xf32> to vector<2x128xf32>
    %34 = arith.addf %31, %33 : vector<2x128xf32>
    %35 = arith.negf %34 : vector<2x128xf32>
    %36 = math.exp %35 : vector<2x128xf32>
    %cst_13 = arith.constant 1.000000e+00 : f32
    %37 = vector.broadcast %cst_13 : f32 to vector<2x128xf32>
    %38 = arith.addf %37, %36 : vector<2x128xf32>
    %39 = arith.divf %37, %38 : vector<2x128xf32>
    %40 = vector.extract_strided_slice %39 {offsets = [0, 0], sizes = [2, 32], strides = [1, 1]} : vector<2x128xf32> to vector<2x32xf32>
    %41 = vector.extract_strided_slice %39 {offsets = [0, 32], sizes = [2, 32], strides = [1, 1]} : vector<2x128xf32> to vector<2x32xf32>
    %42 = vector.extract_strided_slice %39 {offsets = [0, 64], sizes = [2, 32], strides = [1, 1]} : vector<2x128xf32> to vector<2x32xf32>
    %cst_14 = arith.constant 2.000000e+00 : f32
    %43 = vector.broadcast %cst_14 : f32 to vector<2x32xf32>
    %44 = arith.mulf %43, %42 : vector<2x32xf32>
    %cst_15 = arith.constant 1.000000e+00 : f32
    %45 = vector.broadcast %cst_15 : f32 to vector<2x32xf32>
    %46 = arith.subf %44, %45 : vector<2x32xf32>
    %47 = vector.extract_strided_slice %39 {offsets = [0, 96], sizes = [2, 32], strides = [1, 1]} : vector<2x128xf32> to vector<2x32xf32>
    %48 = arith.mulf %41, %27 : vector<2x32xf32>
    %49 = arith.mulf %40, %46 : vector<2x32xf32>
    %50 = arith.addf %48, %49 : vector<2x32xf32>
    %51 = math.tanh %50 : vector<2x32xf32>
    %52 = arith.mulf %47, %51 : vector<2x32xf32>
    %53 = arith.truncf %52 : vector<2x32xf32> to vector<2x32xbf16>
    %cst_16 = arith.constant dense<0.000000e+00> : vector<2x128xf32>
    %54 = tpu.matmul %53, %0, %cst_16 {dimension_numbers = #tpu.dot_dimension_numbers<[1], [0], [0], [1], [0, 0, 1, 1], [], []>} : vector<2x32xbf16>, vector<32x128xbf16>, vector<2x128xf32> -> vector<2x128xf32>
    %55 = vector.extract_strided_slice %8 {offsets = [2, 0, 0], sizes = [1, 2, 128], strides = [1, 1, 1]} : vector<8x2x128xf32> to vector<1x2x128xf32>
    %56 = vector.shape_cast %55 : vector<1x2x128xf32> to vector<2x128xf32>
    %57 = arith.addf %54, %56 : vector<2x128xf32>
    %58 = arith.negf %57 : vector<2x128xf32>
    %59 = math.exp %58 : vector<2x128xf32>
    %cst_17 = arith.constant 1.000000e+00 : f32
    %60 = vector.broadcast %cst_17 : f32 to vector<2x128xf32>
    %61 = arith.addf %60, %59 : vector<2x128xf32>
    %62 = arith.divf %60, %61 : vector<2x128xf32>
    %63 = vector.extract_strided_slice %62 {offsets = [0, 0], sizes = [2, 32], strides = [1, 1]} : vector<2x128xf32> to vector<2x32xf32>
    %64 = vector.extract_strided_slice %62 {offsets = [0, 32], sizes = [2, 32], strides = [1, 1]} : vector<2x128xf32> to vector<2x32xf32>
    %65 = vector.extract_strided_slice %62 {offsets = [0, 64], sizes = [2, 32], strides = [1, 1]} : vector<2x128xf32> to vector<2x32xf32>
    %cst_18 = arith.constant 2.000000e+00 : f32
    %66 = vector.broadcast %cst_18 : f32 to vector<2x32xf32>
    %67 = arith.mulf %66, %65 : vector<2x32xf32>
    %cst_19 = arith.constant 1.000000e+00 : f32
    %68 = vector.broadcast %cst_19 : f32 to vector<2x32xf32>
    %69 = arith.subf %67, %68 : vector<2x32xf32>
    %70 = vector.extract_strided_slice %62 {offsets = [0, 96], sizes = [2, 32], strides = [1, 1]} : vector<2x128xf32> to vector<2x32xf32>
    %71 = arith.mulf %64, %50 : vector<2x32xf32>
    %72 = arith.mulf %63, %69 : vector<2x32xf32>
    %73 = arith.addf %71, %72 : vector<2x32xf32>
    %74 = math.tanh %73 : vector<2x32xf32>
    %75 = arith.mulf %70, %74 : vector<2x32xf32>
    %76 = arith.truncf %75 : vector<2x32xf32> to vector<2x32xbf16>
    %cst_20 = arith.constant dense<0.000000e+00> : vector<2x128xf32>
    %77 = tpu.matmul %76, %0, %cst_20 {dimension_numbers = #tpu.dot_dimension_numbers<[1], [0], [0], [1], [0, 0, 1, 1], [], []>} : vector<2x32xbf16>, vector<32x128xbf16>, vector<2x128xf32> -> vector<2x128xf32>
    %78 = vector.extract_strided_slice %8 {offsets = [3, 0, 0], sizes = [1, 2, 128], strides = [1, 1, 1]} : vector<8x2x128xf32> to vector<1x2x128xf32>
    %79 = vector.shape_cast %78 : vector<1x2x128xf32> to vector<2x128xf32>
    %80 = arith.addf %77, %79 : vector<2x128xf32>
    %81 = arith.negf %80 : vector<2x128xf32>
    %82 = math.exp %81 : vector<2x128xf32>
    %cst_21 = arith.constant 1.000000e+00 : f32
    %83 = vector.broadcast %cst_21 : f32 to vector<2x128xf32>
    %84 = arith.addf %83, %82 : vector<2x128xf32>
    %85 = arith.divf %83, %84 : vector<2x128xf32>
    %86 = vector.extract_strided_slice %85 {offsets = [0, 0], sizes = [2, 32], strides = [1, 1]} : vector<2x128xf32> to vector<2x32xf32>
    %87 = vector.extract_strided_slice %85 {offsets = [0, 32], sizes = [2, 32], strides = [1, 1]} : vector<2x128xf32> to vector<2x32xf32>
    %88 = vector.extract_strided_slice %85 {offsets = [0, 64], sizes = [2, 32], strides = [1, 1]} : vector<2x128xf32> to vector<2x32xf32>
    %cst_22 = arith.constant 2.000000e+00 : f32
    %89 = vector.broadcast %cst_22 : f32 to vector<2x32xf32>
    %90 = arith.mulf %89, %88 : vector<2x32xf32>
    %cst_23 = arith.constant 1.000000e+00 : f32
    %91 = vector.broadcast %cst_23 : f32 to vector<2x32xf32>
    %92 = arith.subf %90, %91 : vector<2x32xf32>
    %93 = vector.extract_strided_slice %85 {offsets = [0, 96], sizes = [2, 32], strides = [1, 1]} : vector<2x128xf32> to vector<2x32xf32>
    %94 = arith.mulf %87, %73 : vector<2x32xf32>
    %95 = arith.mulf %86, %92 : vector<2x32xf32>
    %96 = arith.addf %94, %95 : vector<2x32xf32>
    %97 = math.tanh %96 : vector<2x32xf32>
    %98 = arith.mulf %93, %97 : vector<2x32xf32>
    %99 = arith.truncf %98 : vector<2x32xf32> to vector<2x32xbf16>
    %cst_24 = arith.constant dense<0.000000e+00> : vector<2x128xf32>
    %100 = tpu.matmul %99, %0, %cst_24 {dimension_numbers = #tpu.dot_dimension_numbers<[1], [0], [0], [1], [0, 0, 1, 1], [], []>} : vector<2x32xbf16>, vector<32x128xbf16>, vector<2x128xf32> -> vector<2x128xf32>
    %101 = vector.extract_strided_slice %8 {offsets = [4, 0, 0], sizes = [1, 2, 128], strides = [1, 1, 1]} : vector<8x2x128xf32> to vector<1x2x128xf32>
    %102 = vector.shape_cast %101 : vector<1x2x128xf32> to vector<2x128xf32>
    %103 = arith.addf %100, %102 : vector<2x128xf32>
    %104 = arith.negf %103 : vector<2x128xf32>
    %105 = math.exp %104 : vector<2x128xf32>
    %cst_25 = arith.constant 1.000000e+00 : f32
    %106 = vector.broadcast %cst_25 : f32 to vector<2x128xf32>
    %107 = arith.addf %106, %105 : vector<2x128xf32>
    %108 = arith.divf %106, %107 : vector<2x128xf32>
    %109 = vector.extract_strided_slice %108 {offsets = [0, 0], sizes = [2, 32], strides = [1, 1]} : vector<2x128xf32> to vector<2x32xf32>
    %110 = vector.extract_strided_slice %108 {offsets = [0, 32], sizes = [2, 32], strides = [1, 1]} : vector<2x128xf32> to vector<2x32xf32>
    %111 = vector.extract_strided_slice %108 {offsets = [0, 64], sizes = [2, 32], strides = [1, 1]} : vector<2x128xf32> to vector<2x32xf32>
    %cst_26 = arith.constant 2.000000e+00 : f32
    %112 = vector.broadcast %cst_26 : f32 to vector<2x32xf32>
    %113 = arith.mulf %112, %111 : vector<2x32xf32>
    %cst_27 = arith.constant 1.000000e+00 : f32
    %114 = vector.broadcast %cst_27 : f32 to vector<2x32xf32>
    %115 = arith.subf %113, %114 : vector<2x32xf32>
    %116 = vector.extract_strided_slice %108 {offsets = [0, 96], sizes = [2, 32], strides = [1, 1]} : vector<2x128xf32> to vector<2x32xf32>
    %117 = arith.mulf %110, %96 : vector<2x32xf32>
    %118 = arith.mulf %109, %115 : vector<2x32xf32>
    %119 = arith.addf %117, %118 : vector<2x32xf32>
    %120 = math.tanh %119 : vector<2x32xf32>
    %121 = arith.mulf %116, %120 : vector<2x32xf32>
    %122 = arith.truncf %121 : vector<2x32xf32> to vector<2x32xbf16>
    %cst_28 = arith.constant dense<0.000000e+00> : vector<2x128xf32>
    %123 = tpu.matmul %122, %0, %cst_28 {dimension_numbers = #tpu.dot_dimension_numbers<[1], [0], [0], [1], [0, 0, 1, 1], [], []>} : vector<2x32xbf16>, vector<32x128xbf16>, vector<2x128xf32> -> vector<2x128xf32>
    %124 = vector.extract_strided_slice %8 {offsets = [5, 0, 0], sizes = [1, 2, 128], strides = [1, 1, 1]} : vector<8x2x128xf32> to vector<1x2x128xf32>
    %125 = vector.shape_cast %124 : vector<1x2x128xf32> to vector<2x128xf32>
    %126 = arith.addf %123, %125 : vector<2x128xf32>
    %127 = arith.negf %126 : vector<2x128xf32>
    %128 = math.exp %127 : vector<2x128xf32>
    %cst_29 = arith.constant 1.000000e+00 : f32
    %129 = vector.broadcast %cst_29 : f32 to vector<2x128xf32>
    %130 = arith.addf %129, %128 : vector<2x128xf32>
    %131 = arith.divf %129, %130 : vector<2x128xf32>
    %132 = vector.extract_strided_slice %131 {offsets = [0, 0], sizes = [2, 32], strides = [1, 1]} : vector<2x128xf32> to vector<2x32xf32>
    %133 = vector.extract_strided_slice %131 {offsets = [0, 32], sizes = [2, 32], strides = [1, 1]} : vector<2x128xf32> to vector<2x32xf32>
    %134 = vector.extract_strided_slice %131 {offsets = [0, 64], sizes = [2, 32], strides = [1, 1]} : vector<2x128xf32> to vector<2x32xf32>
    %cst_30 = arith.constant 2.000000e+00 : f32
    %135 = vector.broadcast %cst_30 : f32 to vector<2x32xf32>
    %136 = arith.mulf %135, %134 : vector<2x32xf32>
    %cst_31 = arith.constant 1.000000e+00 : f32
    %137 = vector.broadcast %cst_31 : f32 to vector<2x32xf32>
    %138 = arith.subf %136, %137 : vector<2x32xf32>
    %139 = vector.extract_strided_slice %131 {offsets = [0, 96], sizes = [2, 32], strides = [1, 1]} : vector<2x128xf32> to vector<2x32xf32>
    %140 = arith.mulf %133, %119 : vector<2x32xf32>
    %141 = arith.mulf %132, %138 : vector<2x32xf32>
    %142 = arith.addf %140, %141 : vector<2x32xf32>
    %143 = math.tanh %142 : vector<2x32xf32>
    %144 = arith.mulf %139, %143 : vector<2x32xf32>
    %145 = arith.truncf %144 : vector<2x32xf32> to vector<2x32xbf16>
    %cst_32 = arith.constant dense<0.000000e+00> : vector<2x128xf32>
    %146 = tpu.matmul %145, %0, %cst_32 {dimension_numbers = #tpu.dot_dimension_numbers<[1], [0], [0], [1], [0, 0, 1, 1], [], []>} : vector<2x32xbf16>, vector<32x128xbf16>, vector<2x128xf32> -> vector<2x128xf32>
    %147 = vector.extract_strided_slice %8 {offsets = [6, 0, 0], sizes = [1, 2, 128], strides = [1, 1, 1]} : vector<8x2x128xf32> to vector<1x2x128xf32>
    %148 = vector.shape_cast %147 : vector<1x2x128xf32> to vector<2x128xf32>
    %149 = arith.addf %146, %148 : vector<2x128xf32>
    %150 = arith.negf %149 : vector<2x128xf32>
    %151 = math.exp %150 : vector<2x128xf32>
    %cst_33 = arith.constant 1.000000e+00 : f32
    %152 = vector.broadcast %cst_33 : f32 to vector<2x128xf32>
    %153 = arith.addf %152, %151 : vector<2x128xf32>
    %154 = arith.divf %152, %153 : vector<2x128xf32>
    %155 = vector.extract_strided_slice %154 {offsets = [0, 0], sizes = [2, 32], strides = [1, 1]} : vector<2x128xf32> to vector<2x32xf32>
    %156 = vector.extract_strided_slice %154 {offsets = [0, 32], sizes = [2, 32], strides = [1, 1]} : vector<2x128xf32> to vector<2x32xf32>
    %157 = vector.extract_strided_slice %154 {offsets = [0, 64], sizes = [2, 32], strides = [1, 1]} : vector<2x128xf32> to vector<2x32xf32>
    %cst_34 = arith.constant 2.000000e+00 : f32
    %158 = vector.broadcast %cst_34 : f32 to vector<2x32xf32>
    %159 = arith.mulf %158, %157 : vector<2x32xf32>
    %cst_35 = arith.constant 1.000000e+00 : f32
    %160 = vector.broadcast %cst_35 : f32 to vector<2x32xf32>
    %161 = arith.subf %159, %160 : vector<2x32xf32>
    %162 = vector.extract_strided_slice %154 {offsets = [0, 96], sizes = [2, 32], strides = [1, 1]} : vector<2x128xf32> to vector<2x32xf32>
    %163 = arith.mulf %156, %142 : vector<2x32xf32>
    %164 = arith.mulf %155, %161 : vector<2x32xf32>
    %165 = arith.addf %163, %164 : vector<2x32xf32>
    %166 = math.tanh %165 : vector<2x32xf32>
    %167 = arith.mulf %162, %166 : vector<2x32xf32>
    %168 = arith.truncf %167 : vector<2x32xf32> to vector<2x32xbf16>
    %cst_36 = arith.constant dense<0.000000e+00> : vector<2x128xf32>
    %169 = tpu.matmul %168, %0, %cst_36 {dimension_numbers = #tpu.dot_dimension_numbers<[1], [0], [0], [1], [0, 0, 1, 1], [], []>} : vector<2x32xbf16>, vector<32x128xbf16>, vector<2x128xf32> -> vector<2x128xf32>
    %170 = vector.extract_strided_slice %8 {offsets = [7, 0, 0], sizes = [1, 2, 128], strides = [1, 1, 1]} : vector<8x2x128xf32> to vector<1x2x128xf32>
    %171 = vector.shape_cast %170 : vector<1x2x128xf32> to vector<2x128xf32>
    %172 = arith.addf %169, %171 : vector<2x128xf32>
    %173 = arith.negf %172 : vector<2x128xf32>
    %174 = math.exp %173 : vector<2x128xf32>
    %cst_37 = arith.constant 1.000000e+00 : f32
    %175 = vector.broadcast %cst_37 : f32 to vector<2x128xf32>
    %176 = arith.addf %175, %174 : vector<2x128xf32>
    %177 = arith.divf %175, %176 : vector<2x128xf32>
    %178 = vector.extract_strided_slice %177 {offsets = [0, 0], sizes = [2, 32], strides = [1, 1]} : vector<2x128xf32> to vector<2x32xf32>
    %179 = vector.extract_strided_slice %177 {offsets = [0, 32], sizes = [2, 32], strides = [1, 1]} : vector<2x128xf32> to vector<2x32xf32>
    %180 = vector.extract_strided_slice %177 {offsets = [0, 64], sizes = [2, 32], strides = [1, 1]} : vector<2x128xf32> to vector<2x32xf32>
    %cst_38 = arith.constant 2.000000e+00 : f32
    %181 = vector.broadcast %cst_38 : f32 to vector<2x32xf32>
    %182 = arith.mulf %181, %180 : vector<2x32xf32>
    %cst_39 = arith.constant 1.000000e+00 : f32
    %183 = vector.broadcast %cst_39 : f32 to vector<2x32xf32>
    %184 = arith.subf %182, %183 : vector<2x32xf32>
    %185 = vector.extract_strided_slice %177 {offsets = [0, 96], sizes = [2, 32], strides = [1, 1]} : vector<2x128xf32> to vector<2x32xf32>
    %186 = arith.mulf %179, %165 : vector<2x32xf32>
    %187 = arith.mulf %178, %184 : vector<2x32xf32>
    %188 = arith.addf %186, %187 : vector<2x32xf32>
    %189 = math.tanh %188 : vector<2x32xf32>
    %190 = arith.mulf %185, %189 : vector<2x32xf32>
    %191 = arith.truncf %190 : vector<2x32xf32> to vector<2x32xbf16>
    %c0_40 = arith.constant 0 : index
    %c0_41 = arith.constant 0 : index
    %192 = vector.load %arg5[%c0_40, %c0_41] : memref<32x128xbf16, #tpu.memory_space<vmem>>, vector<32x128xbf16>
    %cst_42 = arith.constant dense<0.000000e+00> : vector<2x128xf32>
    %193 = tpu.matmul %191, %192, %cst_42 {dimension_numbers = #tpu.dot_dimension_numbers<[1], [0], [0], [1], [0, 0, 1, 1], [], []>} : vector<2x32xbf16>, vector<32x128xbf16>, vector<2x128xf32> -> vector<2x128xf32>
    %c0_43 = arith.constant 0 : index
    %c0_44 = arith.constant 0 : index
    %194 = vector.load %arg6[%c0_43, %c0_44] : memref<1x128xf32, #tpu.memory_space<vmem>>, vector<1x128xf32>
    %195 = vector.broadcast %194 : vector<1x128xf32> to vector<2x128xf32>
    %196 = arith.addf %193, %195 : vector<2x128xf32>
    %cst_45 = arith.constant 0.000000e+00 : f32
    %197 = vector.broadcast %cst_45 : f32 to vector<2x128xf32>
    %198 = arith.maximumf %196, %197 : vector<2x128xf32>
    %199 = arith.truncf %198 : vector<2x128xf32> to vector<2x128xbf16>
    %c0_46 = arith.constant 0 : index
    %c0_47 = arith.constant 0 : index
    %200 = vector.load %arg7[%c0_46, %c0_47] : memref<128x128xbf16, #tpu.memory_space<vmem>>, vector<128x128xbf16>
    %cst_48 = arith.constant dense<0.000000e+00> : vector<2x128xf32>
    %201 = tpu.matmul %199, %200, %cst_48 {dimension_numbers = #tpu.dot_dimension_numbers<[1], [0], [0], [1], [0, 0, 1, 1], [], []>} : vector<2x128xbf16>, vector<128x128xbf16>, vector<2x128xf32> -> vector<2x128xf32>
    %c0_49 = arith.constant 0 : index
    %c0_50 = arith.constant 0 : index
    %202 = vector.load %arg8[%c0_49, %c0_50] : memref<1x128xf32, #tpu.memory_space<vmem>>, vector<1x128xf32>
    %203 = vector.broadcast %202 : vector<1x128xf32> to vector<2x128xf32>
    %204 = arith.addf %201, %203 : vector<2x128xf32>
    %cst_51 = arith.constant dense<0xFF800000> : vector<2xf32>
    %205 = vector.multi_reduction <maximumf>, %204, %cst_51 [1] : vector<2x128xf32> to vector<2xf32>
    %206 = vector.shape_cast %205 : vector<2xf32> to vector<2x1xf32>
    %207 = vector.broadcast %206 : vector<2x1xf32> to vector<2x128xf32>
    %208 = arith.subf %204, %207 : vector<2x128xf32>
    %209 = math.exp %208 : vector<2x128xf32>
    %cst_52 = arith.constant dense<0.000000e+00> : vector<2xf32>
    %210 = vector.multi_reduction <add>, %209, %cst_52 [1] : vector<2x128xf32> to vector<2xf32>
    %211 = vector.shape_cast %210 : vector<2xf32> to vector<2x1xf32>
    %212 = tpu.reciprocal %211 : vector<2x1xf32> -> vector<2x1xf32>
    %213 = vector.broadcast %212 : vector<2x1xf32> to vector<2x128xf32>
    %214 = arith.mulf %209, %213 : vector<2x128xf32>
    %c0_53 = arith.constant 0 : index
    %c0_54 = arith.constant 0 : index
    %215 = vector.load %arg9[%c0_53, %c0_54] : memref<2x128xf32, #tpu.memory_space<vmem>>, vector<2x128xf32>
    tpu.vector_store %arg9[%c0_53, %c0_54], %214 {strides = array<i32>} : memref<2x128xf32, #tpu.memory_space<vmem>>, vector<2x128xf32>,
    return
  }
  func.func @transform_0(%arg0: i32) -> (i32, i32, i32) {
    %c0_i32 = arith.constant 0 : i32
    %c0_i32_0 = arith.constant 0 : i32
    %c0_i32_1 = arith.constant 0 : i32
    return %c0_i32, %arg0, %c0_i32_0 : i32, i32, i32
  }
  func.func @transform_1(%arg0: i32) -> (i32, i32) {
    %c0_i32 = arith.constant 0 : i32
    %c0_i32_0 = arith.constant 0 : i32
    %c0_i32_1 = arith.constant 0 : i32
    return %c0_i32, %c0_i32_0 : i32, i32
  }
  func.func @transform_2(%arg0: i32) -> (i32, i32) {
    %c0_i32 = arith.constant 0 : i32
    %c0_i32_0 = arith.constant 0 : i32
    %c0_i32_1 = arith.constant 0 : i32
    return %c0_i32, %c0_i32_0 : i32, i32
  }
  func.func @transform_3(%arg0: i32) -> (i32, i32) {
    %c0_i32 = arith.constant 0 : i32
    %c0_i32_0 = arith.constant 0 : i32
    %c0_i32_1 = arith.constant 0 : i32
    return %c0_i32, %c0_i32_0 : i32, i32
  }
  func.func @transform_4(%arg0: i32) -> (i32, i32) {
    %c0_i32 = arith.constant 0 : i32
    %c0_i32_0 = arith.constant 0 : i32
    %c0_i32_1 = arith.constant 0 : i32
    return %c0_i32, %c0_i32_0 : i32, i32
  }
  func.func @transform_5(%arg0: i32) -> (i32, i32) {
    %c0_i32 = arith.constant 0 : i32
    %c0_i32_0 = arith.constant 0 : i32
    %c0_i32_1 = arith.constant 0 : i32
    return %c0_i32, %c0_i32_0 : i32, i32
  }
  func.func @transform_6(%arg0: i32) -> (i32, i32) {
    %c0_i32 = arith.constant 0 : i32
    %c0_i32_0 = arith.constant 0 : i32
    %c0_i32_1 = arith.constant 0 : i32
    return %c0_i32, %c0_i32_0 : i32, i32
  }
  func.func @transform_7(%arg0: i32) -> (i32, i32) {
    %c0_i32 = arith.constant 0 : i32
    %c0_i32_0 = arith.constant 0 : i32
    %c0_i32_1 = arith.constant 0 : i32
    return %c0_i32, %c0_i32_0 : i32, i32
  }
  func.func @transform_8(%arg0: i32) -> (i32, i32) {
    %c0_i32 = arith.constant 0 : i32
    %c0_i32_0 = arith.constant 0 : i32
    return %arg0, %c0_i32 : i32, i32
  }
}

</mosaic_0001>

<llo_original>
// kernel: mul.17
$region0: #{mul.17}
  #allocation0 [shape = 's32[1]{0}', space=sflag, size = 0x4, scoped, tag = 'scoped memory for mul.17']
  %s0 = inlined_call_operand.vmem [shape: f32[1,128], index: 0, kind: input, shape index: {}]
  %s1 = inlined_call_operand.vmem [shape: f32[1,128], index: 1, kind: input, shape index: {}]
  %s2 = inlined_call_operand.vmem [shape: f32[1,128], index: 2, kind: output, shape index: {}]
  %v3 = vld [vmem:[%s0] sm:$0x1]
  %v4 = vld [vmem:[%s1] sm:$0x1]
  %5 = xla_tuple %v3, %v4
  %6 = xla_tuple %5
  %v7 = vmul.f32 %v3, %v4
  %8 = xla_tuple %v7
  %9 = vst [vmem:[%s2] sm:$0x1] %v7

// kernel: policy_network_forward.1
$region0: #{policy_network_forward.1}
  #allocation0 [shape = 'u32[]', space=smem, size = 0x4, offset = 0x4, fixed_abs, tag = 'smem constant byte address 0x4 - core index']
  #allocation1 [shape = 'u32[72,128]{1,0:T(1,128)}', space=vmem, size = 0x9000, scoped, tag = 'internal scratch']
  %s0 = inlined_call_operand.vmem [shape: bf16[8,2,16], index: 0, kind: input, shape index: {}]
  %s1 = inlined_call_operand.vmem [shape: bf16[16,128], index: 1, kind: input, shape index: {}]
  %s2 = inlined_call_operand.vmem [shape: bf16[32,128], index: 2, kind: input, shape index: {}]
  %s3 = inlined_call_operand.vmem [shape: f32[1,128], index: 3, kind: input, shape index: {}]
  %s4 = inlined_call_operand.vmem [shape: bf16[32,128], index: 4, kind: input, shape index: {}]
  %s5 = inlined_call_operand.vmem [shape: f32[1,128], index: 5, kind: input, shape index: {}]
  %s6 = inlined_call_operand.vmem [shape: bf16[128,128], index: 6, kind: input, shape index: {}]
  %s7 = inlined_call_operand.vmem [shape: f32[1,128], index: 7, kind: input, shape index: {}]
  %s8 = inlined_call_operand.hbm [shape: f32[2,128], index: 8, kind: output, shape index: {}]
  %s9 = sld [smem:[#allocation0]]
  $region42: #{policy_network_forward.1} parent=0
    _
  %s11 = ssub.s32 1, %s9
  %s12 = scalar_select 0, %s11, %s9
  $region1: #{policy_network_forward.1} parent=0
    #allocation2 [shape = 'u8[1024]{0}', space=vmem, size = 0x400, scoped, tag = 'output window, operand 0, single buffered']
    #allocation3 [shape = 's32[1]{0}', space=sflag, size = 0x4, scoped, tag = 'scoped memory for policy_network_forward.1']
    %13 = vsyncpa [#allocation3], 0
    // Predicated region
    $region2: #{policy_network_forward.1} parent=1 // pred_check
      _
    $region3: #{policy_network_forward.1} parent=1 // pred_check_branch
      %15 = sbr.rel (0) target = $region5
    $region4: #{policy_network_forward.1} parent=1 // pred_region
      _
    $region5: #{policy_network_forward.1} parent=1 // pred_fallthru
      _
    // Predicated region
    $region6: #{policy_network_forward.1} parent=1 // pred_check
      _
    $region7: #{policy_network_forward.1} parent=1 // pred_check_branch
      %17 = sbr.rel (0) target = $region9
    $region8: #{policy_network_forward.1} parent=1 // pred_region
      _
    $region9: #{policy_network_forward.1} parent=1 // pred_fallthru
      _
    // Predicated region
    $region10: #{policy_network_forward.1} parent=1 // pred_check
      _
    $region11: #{policy_network_forward.1} parent=1 // pred_check_branch
      %19 = sbr.rel (0) target = $region13
    $region12: #{policy_network_forward.1} parent=1 // pred_region
      _
    $region13: #{policy_network_forward.1} parent=1 // pred_fallthru
      _
    // Predicated region
    $region14: #{policy_network_forward.1} parent=1 // pred_check
      _
    $region15: #{policy_network_forward.1} parent=1 // pred_check_branch
      %21 = sbr.rel (0) target = $region17
    $region16: #{policy_network_forward.1} parent=1 // pred_region
      _
    $region17: #{policy_network_forward.1} parent=1 // pred_fallthru
      _
    // Predicated region
    $region18: #{policy_network_forward.1} parent=1 // pred_check
      _
    $region19: #{policy_network_forward.1} parent=1 // pred_check_branch
      %23 = sbr.rel (0) target = $region21
    $region20: #{policy_network_forward.1} parent=1 // pred_region
      _
    $region21: #{policy_network_forward.1} parent=1 // pred_fallthru
      _
    // Predicated region
    $region22: #{policy_network_forward.1} parent=1 // pred_check
      _
    $region23: #{policy_network_forward.1} parent=1 // pred_check_branch
      %25 = sbr.rel (0) target = $region25
    $region24: #{policy_network_forward.1} parent=1 // pred_region
      _
    $region25: #{policy_network_forward.1} parent=1 // pred_fallthru
      _
    // Predicated region
    $region26: #{policy_network_forward.1} parent=1 // pred_check
      _
    $region27: #{policy_network_forward.1} parent=1 // pred_check_branch
      %27 = sbr.rel (0) target = $region29
    $region28: #{policy_network_forward.1} parent=1 // pred_region
      _
    $region29: #{policy_network_forward.1} parent=1 // pred_fallthru
      _
    // Predicated region
    $region30: #{policy_network_forward.1} parent=1 // pred_check
      _
    $region31: #{policy_network_forward.1} parent=1 // pred_check_branch
      %29 = sbr.rel (0) target = $region33
    $region32: #{policy_network_forward.1} parent=1 // pred_region
      _
    $region33: #{policy_network_forward.1} parent=1 // pred_fallthru
      _
    %v31 = vld [vmem:[%s2] sm:$0xf]
    %v32 = vld [vmem:[%s2 + $0x4] sm:$0xf]
    %v33 = vld [vmem:[%s2 + $0x8] sm:$0xf]
    %v34 = vld [vmem:[%s2 + $0xc] sm:$0xf]
    %v35 = vld [vmem:[%s0] sm:$0x1]
    %v36 = vld [vmem:[%s0 + $0x1] sm:$0x1]
    %v37 = vld [vmem:[%s0 + $0x2] sm:$0x1]
    %v38 = vld [vmem:[%s0 + $0x3] sm:$0x1]
    %v39 = vld [vmem:[%s0 + $0x4] sm:$0x1]
    %v40 = vld [vmem:[%s0 + $0x5] sm:$0x1]
    %v41 = vld [vmem:[%s0 + $0x6] sm:$0x1]
    %v42 = vld [vmem:[%s0 + $0x7] sm:$0x1]
    %v43 = vld [vmem:[%s1] sm:$0xf]
    %v44 = vld [vmem:[%s1 + $0x4] sm:$0xf]
    %v45 = vld [vmem:[%s3] sm:$0x1]
    %v47 = vperm.slane %v45, 0
    %50 = vst [vmem:[#allocation1] ss:$9 sm:$0xff] %v35
    %s52 = scalar_lea.vmem [#allocation1], 1
    %53 = vst [vmem:[%s52] ss:$9 sm:$0xff] %v36
    %s55 = scalar_lea.vmem [#allocation1], 2
    %56 = vst [vmem:[%s55] ss:$9 sm:$0xff] %v37
    %s58 = scalar_lea.vmem [#allocation1], 3
    %59 = vst [vmem:[%s58] ss:$9 sm:$0xff] %v38
    %s61 = scalar_lea.vmem [#allocation1], 4
    %62 = vst [vmem:[%s61] ss:$9 sm:$0xff] %v39
    %s64 = scalar_lea.vmem [#allocation1], 5
    %65 = vst [vmem:[%s64] ss:$9 sm:$0xff] %v40
    %s67 = scalar_lea.vmem [#allocation1], 6
    %68 = vst [vmem:[%s67] ss:$9 sm:$0xff] %v41
    %s70 = scalar_lea.vmem [#allocation1], 7
    %71 = vst [vmem:[%s70] ss:$9 sm:$0xff] %v42
    %v72 = vld [vmem:[#allocation1] sm:$0xff]
    %v75 = vunpack.c.l.b16 %v43
    %v76 = vunpack.c.l.b16 %v44
    %v77 = vpack.c.b16 %v76, %v75
    %vm79 = vcmask 130048
    %v80 = vsel %vm79, %v72, 0
    %82 = vmatpush.bf16.msra.mxu0 0
    %83 = vmatpush.bf16.msra.mxu0 0
    %84 = vmatpush.bf16.msra.mxu0 0
    %85 = vmatpush.bf16.msra.mxu0 0
    %86 = vmatpush.bf16.msra.mxu0 0
    %87 = vmatpush.bf16.msra.mxu0 0
    %88 = vmatpush.bf16.msra.mxu0 0
    %89 = vmatpush.bf16.msra.mxu0 %v77
    %90 = vmatmul.bf16.gmra.mxu0 %v80
    %v91 = vpop.f32.mrf.mxu0
    %v92 = vadd.f32 %v47, %v91
    %v93 = vpop.f32.mrf.mxu0
    %v94 = vadd.f32 %v47, %v93
    %95 = vdwg.mxu0
    %v98 = vrot.slane %v92, 2
    %v99 = vrot.slane %v92, 4
    %v100 = vrot.slane %v92, 6
    %v101 = vrot.slane %v94, 2
    %v102 = vrot.slane %v94, 4
    %v103 = vrot.slane %v94, 6
    %v110 = vxor.u32 %v92, 2147483648
    %v111 = vmul.f32 %v110, 1.442695
    %v112 = vpow.pop %v111
    %v113 = vadd.f32 %v112, 1.0
    %v114 = vrcp.pop %v113
    %v115 = vmul.f32 %v113, %v114
    %v116 = vsub.f32 1.0, %v115
    %v117 = vmul.f32 %v114, %v116
    %v118 = vadd.f32 %v114, %v117
    %vm119 = vweird.f32 %v113
    %vm120 = vweird.f32 %v114
    %vm121 = vmor %vm119, %vm120
    %v122 = vsel %vm121, %v114, %v118
    %v123 = vand.u32 2147483647, %v113
    %vm124 = vcmp.eq.f32.partialorder %v123, 8.507059e+37
    %v125 = vand.u32 %v113, 2147483648
    %v126 = vor.u32 1.1754944e-38, %v125
    %v127 = vsel %vm124, %v126, %v122
    %v128 = vmul.f32 1.0, %v127
    %v129 = vmul.f32 %v128, 2.0
    %v130 = vsub.f32 %v129, 1.0
    %v131 = vmul.f32 %v128, 0.0
    %133 = vrot.lane.b32.xlu0 %v130, 64
    %v134 = vpop.permute.xlu0 %133
    %v136 = vmul.f32 %v128, %v134
    %138 = vrot.lane.b32.xlu0 %v136, 32
    %v139 = vpop.permute.xlu0 %138
    %v141 = vadd.f32 %v131, %v139
    %v142 = vtanh.pop %v141
    %144 = vrot.lane.b32.xlu0 %v142, 64
    %v145 = vpop.permute.xlu0 %144
    %v147 = vmul.f32 %v128, %v145
    %v148 = vpack.c.bf16 %v147, %v147
    %150 = vrot.lane.b32.xlu0 %v148, 32
    %v151 = vpop.permute.xlu0 %150
    %v156 = vunpack.c.l.b16 %v31
    %v157 = vunpack.c.l.b16 %v32
    %v158 = vunpack.c.l.b16 %v33
    %v159 = vunpack.c.l.b16 %v34
    %v160 = vpack.c.b16 %v157, %v156
    %v161 = vpack.c.b16 %v159, %v158
    %vm164 = vcmask 261120
    %v166 = vsel %vm164, %v151, 0
    %168 = vmatpush.bf16.msra.mxu0 0
    %169 = vmatpush.bf16.msra.mxu0 0
    %170 = vmatpush.bf16.msra.mxu0 0
    %171 = vmatpush.bf16.msra.mxu0 0
    %172 = vmatpush.bf16.msra.mxu0 0
    %173 = vmatpush.bf16.msra.mxu0 0
    %174 = vmatpush.bf16.msra.mxu0 %v161
    %175 = vmatpush.bf16.msra.mxu0 %v160
    %176 = vmatmul.bf16.gmra.mxu0 %v166
    %v177 = vpop.f32.mrf.mxu0
    %v178 = vadd.f32 %v98, %v177
    %v179 = vpop.f32.mrf.mxu0
    %180 = vdwg.mxu0
    %v181 = vxor.u32 %v178, 2147483648
    %v182 = vmul.f32 %v181, 1.442695
    %v183 = vpow.pop %v182
    %v184 = vadd.f32 %v183, 1.0
    %v185 = vrcp.pop %v184
    %v186 = vmul.f32 %v184, %v185
    %v187 = vsub.f32 1.0, %v186
    %v188 = vmul.f32 %v185, %v187
    %v189 = vadd.f32 %v185, %v188
    %vm190 = vweird.f32 %v184
    %vm191 = vweird.f32 %v185
    %vm192 = vmor %vm190, %vm191
    %v193 = vsel %vm192, %v185, %v189
    %v194 = vand.u32 2147483647, %v184
    %vm195 = vcmp.eq.f32.partialorder %v194, 8.507059e+37
    %v196 = vand.u32 %v184, 2147483648
    %v197 = vor.u32 1.1754944e-38, %v196
    %v198 = vsel %vm195, %v197, %v193
    %v199 = vmul.f32 1.0, %v198
    %v200 = vmul.f32 %v199, 2.0
    %v201 = vsub.f32 %v200, 1.0
    %v202 = vmul.f32 %v199, %v141
    %204 = vrot.lane.b32.xlu0 %v201, 64
    %v205 = vpop.permute.xlu0 %204
    %v207 = vmul.f32 %v199, %v205
    %209 = vrot.lane.b32.xlu0 %v207, 32
    %v210 = vpop.permute.xlu0 %209
    %v212 = vadd.f32 %v202, %v210
    %v213 = vtanh.pop %v212
    %215 = vrot.lane.b32.xlu0 %v213, 64
    %v216 = vpop.permute.xlu0 %215
    %v218 = vmul.f32 %v199, %v216
    %v219 = vpack.c.bf16 %v218, %v218
    %221 = vrot.lane.b32.xlu0 %v219, 32
    %v222 = vpop.permute.xlu0 %221
    %v224 = vsel %vm164, %v222, 0
    %226 = vmatpush.bf16.msra.mxu0 0
    %227 = vmatpush.bf16.msra.mxu0 0
    %228 = vmatpush.bf16.msra.mxu0 0
    %229 = vmatpush.bf16.msra.mxu0 0
    %230 = vmatpush.bf16.msra.mxu0 0
    %231 = vmatpush.bf16.msra.mxu0 0
    %232 = vmatpush.bf16.msra.mxu0 %v161
    %233 = vmatpush.bf16.msra.mxu0 %v160
    %234 = vmatmul.bf16.gmra.mxu0 %v224
    %v235 = vpop.f32.mrf.mxu0
    %v236 = vadd.f32 %v99, %v235
    %v237 = vpop.f32.mrf.mxu0
    %238 = vdwg.mxu0
    %v239 = vxor.u32 %v236, 2147483648
    %v240 = vmul.f32 %v239, 1.442695
    %v241 = vpow.pop %v240
    %v242 = vadd.f32 %v241, 1.0
    %v243 = vrcp.pop %v242
    %v244 = vmul.f32 %v242, %v243
    %v245 = vsub.f32 1.0, %v244
    %v246 = vmul.f32 %v243, %v245
    %v247 = vadd.f32 %v243, %v246
    %vm248 = vweird.f32 %v242
    %vm249 = vweird.f32 %v243
    %vm250 = vmor %vm248, %vm249
    %v251 = vsel %vm250, %v243, %v247
    %v252 = vand.u32 2147483647, %v242
    %vm253 = vcmp.eq.f32.partialorder %v252, 8.507059e+37
    %v254 = vand.u32 %v242, 2147483648
    %v255 = vor.u32 1.1754944e-38, %v254
    %v256 = vsel %vm253, %v255, %v251
    %v257 = vmul.f32 1.0, %v256
    %v258 = vmul.f32 %v257, 2.0
    %v259 = vsub.f32 %v258, 1.0
    %v260 = vmul.f32 %v257, %v212
    %262 = vrot.lane.b32.xlu0 %v259, 64
    %v263 = vpop.permute.xlu0 %262
    %v265 = vmul.f32 %v257, %v263
    %267 = vrot.lane.b32.xlu0 %v265, 32
    %v268 = vpop.permute.xlu0 %267
    %v270 = vadd.f32 %v260, %v268
    %v271 = vtanh.pop %v270
    %273 = vrot.lane.b32.xlu0 %v271, 64
    %v274 = vpop.permute.xlu0 %273
    %v276 = vmul.f32 %v257, %v274
    %v277 = vpack.c.bf16 %v276, %v276
    %279 = vrot.lane.b32.xlu0 %v277, 32
    %v280 = vpop.permute.xlu0 %279
    %v282 = vsel %vm164, %v280, 0
    %284 = vmatpush.bf16.msra.mxu0 0
    %285 = vmatpush.bf16.msra.mxu0 0
    %286 = vmatpush.bf16.msra.mxu0 0
    %287 = vmatpush.bf16.msra.mxu0 0
    %288 = vmatpush.bf16.msra.mxu0 0
    %289 = vmatpush.bf16.msra.mxu0 0
    %290 = vmatpush.bf16.msra.mxu0 %v161
    %291 = vmatpush.bf16.msra.mxu0 %v160
    %292 = vmatmul.bf16.gmra.mxu0 %v282
    %v293 = vpop.f32.mrf.mxu0
    %v294 = vadd.f32 %v100, %v293
    %v295 = vpop.f32.mrf.mxu0
    %296 = vdwg.mxu0
    %v297 = vxor.u32 %v294, 2147483648
    %v298 = vmul.f32 %v297, 1.442695
    %v299 = vpow.pop %v298
    %v300 = vadd.f32 %v299, 1.0
    %v301 = vrcp.pop %v300
    %v302 = vmul.f32 %v300, %v301
    %v303 = vsub.f32 1.0, %v302
    %v304 = vmul.f32 %v301, %v303
    %v305 = vadd.f32 %v301, %v304
    %vm306 = vweird.f32 %v300
    %vm307 = vweird.f32 %v301
    %vm308 = vmor %vm306, %vm307
    %v309 = vsel %vm308, %v301, %v305
    %v310 = vand.u32 2147483647, %v300
    %vm311 = vcmp.eq.f32.partialorder %v310, 8.507059e+37
    %v312 = vand.u32 %v300, 2147483648
    %v313 = vor.u32 1.1754944e-38, %v312
    %v314 = vsel %vm311, %v313, %v309
    %v315 = vmul.f32 1.0, %v314
    %v316 = vmul.f32 %v315, 2.0
    %v317 = vsub.f32 %v316, 1.0
    %v318 = vmul.f32 %v315, %v270
    %320 = vrot.lane.b32.xlu0 %v317, 64
    %v321 = vpop.permute.xlu0 %320
    %v323 = vmul.f32 %v315, %v321
    %325 = vrot.lane.b32.xlu0 %v323, 32
    %v326 = vpop.permute.xlu0 %325
    %v328 = vadd.f32 %v318, %v326
    %v329 = vtanh.pop %v328
    %331 = vrot.lane.b32.xlu0 %v329, 64
    %v332 = vpop.permute.xlu0 %331
    %v334 = vmul.f32 %v315, %v332
    %v335 = vpack.c.bf16 %v334, %v334
    %337 = vrot.lane.b32.xlu0 %v335, 32
    %v338 = vpop.permute.xlu0 %337
    %v340 = vsel %vm164, %v338, 0
    %342 = vmatpush.bf16.msra.mxu0 0
    %343 = vmatpush.bf16.msra.mxu0 0
    %344 = vmatpush.bf16.msra.mxu0 0
    %345 = vmatpush.bf16.msra.mxu0 0
    %346 = vmatpush.bf16.msra.mxu0 0
    %347 = vmatpush.bf16.msra.mxu0 0
    %348 = vmatpush.bf16.msra.mxu0 %v161
    %349 = vmatpush.bf16.msra.mxu0 %v160
    %350 = vmatmul.bf16.gmra.mxu0 %v340
    %v351 = vpop.f32.mrf.mxu0
    %v352 = vadd.f32 %v94, %v351
    %v353 = vpop.f32.mrf.mxu0
    %354 = vdwg.mxu0
    %v355 = vxor.u32 %v352, 2147483648
    %v356 = vmul.f32 %v355, 1.442695
    %v357 = vpow.pop %v356
    %v358 = vadd.f32 %v357, 1.0
    %v359 = vrcp.pop %v358
    %v360 = vmul.f32 %v358, %v359
    %v361 = vsub.f32 1.0, %v360
    %v362 = vmul.f32 %v359, %v361
    %v363 = vadd.f32 %v359, %v362
    %vm364 = vweird.f32 %v358
    %vm365 = vweird.f32 %v359
    %vm366 = vmor %vm364, %vm365
    %v367 = vsel %vm366, %v359, %v363
    %v368 = vand.u32 2147483647, %v358
    %vm369 = vcmp.eq.f32.partialorder %v368, 8.507059e+37
    %v370 = vand.u32 %v358, 2147483648
    %v371 = vor.u32 1.1754944e-38, %v370
    %v372 = vsel %vm369, %v371, %v367
    %v373 = vmul.f32 1.0, %v372
    %v374 = vmul.f32 %v373, 2.0
    %v375 = vsub.f32 %v374, 1.0
    %v376 = vmul.f32 %v373, %v328
    %378 = vrot.lane.b32.xlu0 %v375, 64
    %v379 = vpop.permute.xlu0 %378
    %v381 = vmul.f32 %v373, %v379
    %383 = vrot.lane.b32.xlu0 %v381, 32
    %v384 = vpop.permute.xlu0 %383
    %v386 = vadd.f32 %v376, %v384
    %v387 = vtanh.pop %v386
    %389 = vrot.lane.b32.xlu0 %v387, 64
    %v390 = vpop.permute.xlu0 %389
    %v392 = vmul.f32 %v373, %v390
    %v393 = vpack.c.bf16 %v392, %v392
    %395 = vrot.lane.b32.xlu0 %v393, 32
    %v396 = vpop.permute.xlu0 %395
    %v398 = vsel %vm164, %v396, 0
    %400 = vmatpush.bf16.msra.mxu0 0
    %401 = vmatpush.bf16.msra.mxu0 0
    %402 = vmatpush.bf16.msra.mxu0 0
    %403 = vmatpush.bf16.msra.mxu0 0
    %404 = vmatpush.bf16.msra.mxu0 0
    %405 = vmatpush.bf16.msra.mxu0 0
    %406 = vmatpush.bf16.msra.mxu0 %v161
    %407 = vmatpush.bf16.msra.mxu0 %v160
    %408 = vmatmul.bf16.gmra.mxu0 %v398
    %v409 = vpop.f32.mrf.mxu0
    %v410 = vadd.f32 %v101, %v409
    %v411 = vpop.f32.mrf.mxu0
    %412 = vdwg.mxu0
    %v413 = vxor.u32 %v410, 2147483648
    %v414 = vmul.f32 %v413, 1.442695
    %v415 = vpow.pop %v414
    %v416 = vadd.f32 %v415, 1.0
    %v417 = vrcp.pop %v416
    %v418 = vmul.f32 %v416, %v417
    %v419 = vsub.f32 1.0, %v418
    %v420 = vmul.f32 %v417, %v419
    %v421 = vadd.f32 %v417, %v420
    %vm422 = vweird.f32 %v416
    %vm423 = vweird.f32 %v417
    %vm424 = vmor %vm422, %vm423
    %v425 = vsel %vm424, %v417, %v421
    %v426 = vand.u32 2147483647, %v416
    %vm427 = vcmp.eq.f32.partialorder %v426, 8.507059e+37
    %v428 = vand.u32 %v416, 2147483648
    %v429 = vor.u32 1.1754944e-38, %v428
    %v430 = vsel %vm427, %v429, %v425
    %v431 = vmul.f32 1.0, %v430
    %v432 = vmul.f32 %v431, 2.0
    %v433 = vsub.f32 %v432, 1.0
    %v434 = vmul.f32 %v431, %v386
    %436 = vrot.lane.b32.xlu0 %v433, 64
    %v437 = vpop.permute.xlu0 %436
    %v439 = vmul.f32 %v431, %v437
    %441 = vrot.lane.b32.xlu0 %v439, 32
    %v442 = vpop.permute.xlu0 %441
    %v444 = vadd.f32 %v434, %v442
    %v445 = vtanh.pop %v444
    %447 = vrot.lane.b32.xlu0 %v445, 64
    %v448 = vpop.permute.xlu0 %447
    %v450 = vmul.f32 %v431, %v448
    %v451 = vpack.c.bf16 %v450, %v450
    %453 = vrot.lane.b32.xlu0 %v451, 32
    %v454 = vpop.permute.xlu0 %453
    %v456 = vsel %vm164, %v454, 0
    %458 = vmatpush.bf16.msra.mxu0 0
    %459 = vmatpush.bf16.msra.mxu0 0
    %460 = vmatpush.bf16.msra.mxu0 0
    %461 = vmatpush.bf16.msra.mxu0 0
    %462 = vmatpush.bf16.msra.mxu0 0
    %463 = vmatpush.bf16.msra.mxu0 0
    %464 = vmatpush.bf16.msra.mxu0 %v161
    %465 = vmatpush.bf16.msra.mxu0 %v160
    %466 = vmatmul.bf16.gmra.mxu0 %v456
    %v467 = vpop.f32.mrf.mxu0
    %v468 = vadd.f32 %v102, %v467
    %v469 = vpop.f32.mrf.mxu0
    %470 = vdwg.mxu0
    %v471 = vxor.u32 %v468, 2147483648
    %v472 = vmul.f32 %v471, 1.442695
    %v473 = vpow.pop %v472
    %v474 = vadd.f32 %v473, 1.0
    %v475 = vrcp.pop %v474
    %v476 = vmul.f32 %v474, %v475
    %v477 = vsub.f32 1.0, %v476
    %v478 = vmul.f32 %v475, %v477
    %v479 = vadd.f32 %v475, %v478
    %vm480 = vweird.f32 %v474
    %vm481 = vweird.f32 %v475
    %vm482 = vmor %vm480, %vm481
    %v483 = vsel %vm482, %v475, %v479
    %v484 = vand.u32 2147483647, %v474
    %vm485 = vcmp.eq.f32.partialorder %v484, 8.507059e+37
    %v486 = vand.u32 %v474, 2147483648
    %v487 = vor.u32 1.1754944e-38, %v486
    %v488 = vsel %vm485, %v487, %v483
    %v489 = vmul.f32 1.0, %v488
    %v490 = vmul.f32 %v489, 2.0
    %v491 = vsub.f32 %v490, 1.0
    %v492 = vmul.f32 %v489, %v444
    %494 = vrot.lane.b32.xlu0 %v491, 64
    %v495 = vpop.permute.xlu0 %494
    %v497 = vmul.f32 %v489, %v495
    %499 = vrot.lane.b32.xlu0 %v497, 32
    %v500 = vpop.permute.xlu0 %499
    %v502 = vadd.f32 %v492, %v500
    %v503 = vtanh.pop %v502
    %505 = vrot.lane.b32.xlu0 %v503, 64
    %v506 = vpop.permute.xlu0 %505
    %v508 = vmul.f32 %v489, %v506
    %v509 = vpack.c.bf16 %v508, %v508
    %511 = vrot.lane.b32.xlu0 %v509, 32
    %v512 = vpop.permute.xlu0 %511
    %v514 = vsel %vm164, %v512, 0
    %516 = vmatpush.bf16.msra.mxu0 0
    %517 = vmatpush.bf16.msra.mxu0 0
    %518 = vmatpush.bf16.msra.mxu0 0
    %519 = vmatpush.bf16.msra.mxu0 0
    %520 = vmatpush.bf16.msra.mxu0 0
    %521 = vmatpush.bf16.msra.mxu0 0
    %522 = vmatpush.bf16.msra.mxu0 %v161
    %523 = vmatpush.bf16.msra.mxu0 %v160
    %524 = vmatmul.bf16.gmra.mxu0 %v514
    %v525 = vpop.f32.mrf.mxu0
    %v526 = vadd.f32 %v103, %v525
    %v527 = vpop.f32.mrf.mxu0
    %528 = vdwg.mxu0
    %v529 = vxor.u32 %v526, 2147483648
    %v530 = vmul.f32 %v529, 1.442695
    %v531 = vpow.pop %v530
    %v532 = vadd.f32 %v531, 1.0
    %v533 = vrcp.pop %v532
    %v534 = vmul.f32 %v532, %v533
    %v535 = vsub.f32 1.0, %v534
    %v536 = vmul.f32 %v533, %v535
    %v537 = vadd.f32 %v533, %v536
    %vm538 = vweird.f32 %v532
    %vm539 = vweird.f32 %v533
    %vm540 = vmor %vm538, %vm539
    %v541 = vsel %vm540, %v533, %v537
    %v542 = vand.u32 2147483647, %v532
    %vm543 = vcmp.eq.f32.partialorder %v542, 8.507059e+37
    %v544 = vand.u32 %v532, 2147483648
    %v545 = vor.u32 1.1754944e-38, %v544
    %v546 = vsel %vm543, %v545, %v541
    %v547 = vmul.f32 1.0, %v546
    %v548 = vmul.f32 %v547, 2.0
    %v549 = vsub.f32 %v548, 1.0
    %v550 = vmul.f32 %v547, %v502
    %552 = vrot.lane.b32.xlu0 %v549, 64
    %v553 = vpop.permute.xlu0 %552
    %v555 = vmul.f32 %v547, %v553
    %557 = vrot.lane.b32.xlu0 %v555, 32
    %v558 = vpop.permute.xlu0 %557
    %v560 = vadd.f32 %v550, %v558
    %v561 = vtanh.pop %v560
    %563 = vrot.lane.b32.xlu0 %v561, 64
    %v564 = vpop.permute.xlu0 %563
    %v566 = vmul.f32 %v547, %v564
    %v567 = vpack.c.bf16 %v566, %v566
    %v568 = vld [vmem:[%s4] sm:$0xf]
    %v569 = vld [vmem:[%s4 + $0x4] sm:$0xf]
    %v570 = vld [vmem:[%s4 + $0x8] sm:$0xf]
    %v571 = vld [vmem:[%s4 + $0xc] sm:$0xf]
    %v572 = vld [vmem:[%s5] sm:$0x1]
    %v574 = vperm.slane %v572, 0
    %577 = vrot.lane.b32.xlu0 %v567, 32
    %v578 = vpop.permute.xlu0 %577
    %v583 = vunpack.c.l.b16 %v568
    %v584 = vunpack.c.l.b16 %v569
    %v585 = vunpack.c.l.b16 %v570
    %v586 = vunpack.c.l.b16 %v571
    %v587 = vpack.c.b16 %v584, %v583
    %v588 = vpack.c.b16 %v586, %v585
    %v592 = vsel %vm164, %v578, 0
    %594 = vmatpush.bf16.msra.mxu0 0
    %595 = vmatpush.bf16.msra.mxu0 0
    %596 = vmatpush.bf16.msra.mxu0 0
    %597 = vmatpush.bf16.msra.mxu0 0
    %598 = vmatpush.bf16.msra.mxu0 0
    %599 = vmatpush.bf16.msra.mxu0 0
    %600 = vmatpush.bf16.msra.mxu0 %v588
    %601 = vmatpush.bf16.msra.mxu0 %v587
    %602 = vmatmul.bf16.gmra.mxu0 %v592
    %v603 = vpop.f32.mrf.mxu0
    %v604 = vadd.f32 %v574, %v603
    %v605 = vpop.f32.mrf.mxu0
    %606 = vdwg.mxu0
    %v607 = vmax.f32 %v604, 0.0
    %v608 = vpack.c.bf16 %v607, %v607
    %v609 = vld [vmem:[%s6] sm:$0xf]
    %v610 = vld [vmem:[%s6 + $0x4] sm:$0xf]
    %v611 = vld [vmem:[%s6 + $0x8] sm:$0xf]
    %v612 = vld [vmem:[%s6 + $0xc] sm:$0xf]
    %v613 = vld [vmem:[%s6 + $0x10] sm:$0xf]
    %v614 = vld [vmem:[%s6 + $0x14] sm:$0xf]
    %v615 = vld [vmem:[%s6 + $0x18] sm:$0xf]
    %v616 = vld [vmem:[%s6 + $0x1c] sm:$0xf]
    %v617 = vld [vmem:[%s6 + $0x20] sm:$0xf]
    %v618 = vld [vmem:[%s6 + $0x24] sm:$0xf]
    %v619 = vld [vmem:[%s6 + $0x28] sm:$0xf]
    %v620 = vld [vmem:[%s6 + $0x2c] sm:$0xf]
    %v621 = vld [vmem:[%s6 + $0x30] sm:$0xf]
    %v622 = vld [vmem:[%s6 + $0x34] sm:$0xf]
    %v623 = vld [vmem:[%s6 + $0x38] sm:$0xf]
    %v624 = vld [vmem:[%s6 + $0x3c] sm:$0xf]
    %v625 = vld [vmem:[%s7] sm:$0x1]
    %v627 = vperm.slane %v625, 0
    %v645 = vunpack.c.l.b16 %v609
    %v646 = vunpack.c.l.b16 %v610
    %v647 = vunpack.c.l.b16 %v611
    %v648 = vunpack.c.l.b16 %v612
    %v649 = vunpack.c.l.b16 %v613
    %v650 = vunpack.c.l.b16 %v614
    %v651 = vunpack.c.l.b16 %v615
    %v652 = vunpack.c.l.b16 %v616
    %v653 = vunpack.c.l.b16 %v617
    %v654 = vunpack.c.l.b16 %v618
    %v655 = vunpack.c.l.b16 %v619
    %v656 = vunpack.c.l.b16 %v620
    %v657 = vunpack.c.l.b16 %v621
    %v658 = vunpack.c.l.b16 %v622
    %v659 = vunpack.c.l.b16 %v623
    %v660 = vunpack.c.l.b16 %v624
    %v661 = vpack.c.b16 %v646, %v645
    %v662 = vpack.c.b16 %v648, %v647
    %v663 = vpack.c.b16 %v650, %v649
    %v664 = vpack.c.b16 %v652, %v651
    %v665 = vpack.c.b16 %v654, %v653
    %v666 = vpack.c.b16 %v656, %v655
    %v667 = vpack.c.b16 %v658, %v657
    %v668 = vpack.c.b16 %v660, %v659
    %677 = vmatpush.bf16.msra.mxu0 %v668
    %678 = vmatpush.bf16.msra.mxu0 %v667
    %679 = vmatpush.bf16.msra.mxu0 %v666
    %680 = vmatpush.bf16.msra.mxu0 %v665
    %681 = vmatpush.bf16.msra.mxu0 %v664
    %682 = vmatpush.bf16.msra.mxu0 %v663
    %683 = vmatpush.bf16.msra.mxu0 %v662
    %684 = vmatpush.bf16.msra.mxu0 %v661
    %685 = vmatmul.bf16.gmra.mxu0 %v608
    %v686 = vpop.f32.mrf.mxu0
    %v687 = vadd.f32 %v627, %v686
    %v688 = vpop.f32.mrf.mxu0
    %689 = vdwg.mxu0
    %vm690 = vcmask 1041408
    %v691 = vsel %vm690, %v687, -inf
    %692 = vmax.xlane.f32.xlu0 %v691
    %v693 = vpop.xlane.xlu0 %692
    %v694 = vsub.f32 %v687, %v693
    %v695 = vmul.f32 %v694, 1.442695
    %v696 = vpow.pop %v695
    %v697 = vsel %vm690, %v696, 0.0
    %698 = vadd.xlane.f32.xlu0 %v697
    %v699 = vpop.xlane.xlu0 %698
    %v700 = vrcp.pop %v699
    %v701 = vmul.f32 %v699, %v700
    %v702 = vsub.f32 1.0, %v701
    %v703 = vmul.f32 %v700, %v702
    %v704 = vadd.f32 %v700, %v703
    %vm705 = vweird.f32 %v699
    %vm706 = vweird.f32 %v700
    %vm707 = vmor %vm705, %vm706
    %v708 = vsel %vm707, %v700, %v704
    %v709 = vand.u32 2147483647, %v699
    %vm710 = vcmp.eq.f32.partialorder %v709, 8.507059e+37
    %v711 = vand.u32 %v699, 2147483648
    %v712 = vor.u32 1.1754944e-38, %v711
    %v713 = vsel %vm710, %v712, %v708
    %v714 = vmul.f32 %v696, %v713
    %715 = vst [vmem:[#allocation2] sm:$0x3] %v714
    // Predicated region
    $region34: #{policy_network_forward.1} parent=1 // pred_check
      _
    $region35: #{policy_network_forward.1} parent=1 // pred_check_branch
      %717 = sbr.rel (0) target = $region37
    $region36: #{policy_network_forward.1} parent=1 // pred_region
      %719 = vsyncadd [#allocation3], 0
      %s721 = sshll.u32 [#allocation2], 4
      %s722 = int_to_ptr.vmem [resolvable:$true] %s721
      %s723 = sshll.u32 %s8, 4
      %s724 = int_to_ptr.hbm [resolvable:$true] %s723
      %726 = dma.vmem_to_hbm [thread:$0]  %s722, 32, %s724, [#allocation3]
    $region37: #{policy_network_forward.1} parent=1 // pred_fallthru
      _
    // Predicated region
    $region38: #{policy_network_forward.1} parent=1 // pred_check
      _
    $region39: #{policy_network_forward.1} parent=1 // pred_check_branch
      %728 = sbr.rel (0) target = $region41
    $region40: #{policy_network_forward.1} parent=1 // pred_region
      %730 = dma.done [#allocation3], 32
    $region41: #{policy_network_forward.1} parent=1 // pred_fallthru
      _
    %731 = vsyncpa [#allocation3], 1

</llo_original>
